<compile_context>
chip_gen: v7x
topology: tpu7x:2x2x1
jax: 0.10.0
libtpu: 0.0.40
codegen_flags: <defaults>
</compile_context>

<pallas_src>
import jax
import jax.numpy as jnp
from jax.experimental import pallas as pl
from jax.experimental.pallas import tpu as pltpu


def _round_up(x, m):
    return ((x + m - 1) // m) * m


def _pick_tile(dim, max_tile):
    """Pick a tile for `dim`.

    Returns (tile, padded_dim) with padded_dim % tile == 0 and tile either
    == dim (when dim <= max_tile) or a multiple of 128 <= max_tile.  Keeps
    blocks VMEM-bounded for arbitrary layer sizes (no full-dim blow-up).
    """
    if dim <= max_tile:
        return dim, dim
    t = (max_tile // 128) * 128
    while t >= 128:
        if dim % t == 0:
            return t, dim
        t -= 128
    # No 128-aligned divisor: pad the dimension up to a 128-multiple.
    pdim = _round_up(dim, 128)
    t = (max_tile // 128) * 128
    while t >= 128:
        if pdim % t == 0:
            return t, pdim
        t -= 128
    return 128, pdim


def _linear_kernel(x_ref, w_ref, b_ref, o_ref, acc_ref):
    # x_ref  : (tm, tk) activation tile (input dtype; cast to MXU dtype below)
    # w_ref  : (tk, tn) K-major weight tile (already compute dtype)
    # b_ref  : (1, tn)  bias tile (f32)
    # o_ref  : (tm, tn) output tile
    # acc_ref: (tm, tn) f32 accumulator, resident across the K grid axis
    k = pl.program_id(2)

    @pl.when(k == 0)
    def _():
        acc_ref[...] = jnp.zeros_like(acc_ref)

    acc_ref[...] += jnp.dot(
        x_ref[...].astype(w_ref.dtype),   # in-kernel cast (no extra HBM pass)
        w_ref[...],
        preferred_element_type=jnp.float32,
    )

    @pl.when(k == pl.num_programs(2) - 1)
    def _():
        o_ref[...] = (acc_ref[...] + b_ref[...]).astype(o_ref.dtype)


class QuantLinearPallas:
    """QuantLinear.forward (default quant state) = x @ weight.T + bias."""

    def __init__(self, weight, bias=None, *, tm=512, tn=1024, tk=1024,
                 compute_dtype=jnp.bfloat16):
        out_features, in_features = weight.shape
        self.in_features = in_features
        self.out_features = out_features
        self.tm = tm
        self.tn_eff, self.n_pad = _pick_tile(out_features, tn)
        self.tk_eff, self.k_pad = _pick_tile(in_features, tk)

        # One-time weight preparation (model-init time, like register_buffer):
        # K-major layout so the MXU contracts the RHS sublane axis directly,
        # narrowed to the compute dtype once, zero-padded to the tile grid.
        w_kn = weight.T  # (in_features, out_features)
        if compute_dtype is not None and w_kn.dtype != compute_dtype:
            w_kn = w_kn.astype(compute_dtype)
        if (self.k_pad, self.n_pad) != (in_features, out_features):
            w_kn = jnp.pad(w_kn, ((0, self.k_pad - in_features),
                                  (0, self.n_pad - out_features)))
        self.w_kn = w_kn

        if bias is None:
            b2d = jnp.zeros((1, self.n_pad), jnp.float32)
        else:
            b2d = bias.reshape(1, out_features).astype(jnp.float32)
            if self.n_pad != out_features:
                b2d = jnp.pad(b2d, ((0, 0), (0, self.n_pad - out_features)))
        self.b2d = b2d

        # Default QuantLinear state flags.
        self.use_weight_quant = False
        self.use_act_quant = False
        self.use_temporary_parameter = False

    def set_quant_state(self, weight_quant=False, act_quant=False):
        # TODO(synk): Uniform/Exp/Mix/Mix2 AffineQuantizer are not defined in
        # the provided module source; only the non-quantized path exists.
        if weight_quant or act_quant:
            raise NotImplementedError(
                "fake-quantizers were not provided in the module source")
        self.use_weight_quant = weight_quant
        self.use_act_quant = act_quant

    def __call__(self, x):
        *lead, in_features = x.shape
        assert in_features == self.in_features, "in_features mismatch"
        out_dtype = x.dtype

        m = 1
        for d in lead:
            m *= d
        x2d = x.reshape(m, in_features)
        if self.k_pad != in_features:
            # Only hit when in_features has no 128-aligned divisor <= tk.
            x2d = jnp.pad(x2d, ((0, 0), (0, self.k_pad - in_features)))

        tm_eff = min(self.tm, _round_up(m, 8))
        tn_run = self.tn_eff
        # v7x has 2 TensorCores sharded over the "parallel" grid axes: make
        # sure there are >= 2 parallel tiles whenever the problem allows it.
        if pl.cdiv(m, tm_eff) * (self.n_pad // tn_run) < 2:
            if tn_run % 256 == 0:
                tn_run //= 2
            elif tm_eff >= 16 and m > tm_eff // 2:
                tm_eff //= 2

        grid = (pl.cdiv(m, tm_eff),            # ragged last M tile (no jnp.pad)
                self.n_pad // tn_run,
                self.k_pad // self.tk_eff)     # K innermost, accumulator axis

        w_map = lambda i, j, k: (k, j)
        if grid[0] * grid[1] * grid[2] >= 3:
            # Deepen the weight-stream pipeline (hides DMA bubbles on v6e).
            w_spec = pl.BlockSpec((self.tk_eff, tn_run), w_map,
                                  pipeline_mode=pl.Buffered(3))
        else:
            w_spec = pl.BlockSpec((self.tk_eff, tn_run), w_map)

        out2d = pl.pallas_call(
            _linear_kernel,
            out_shape=jax.ShapeDtypeStruct((m, self.out_features), out_dtype),
            grid=grid,
            in_specs=[
                pl.BlockSpec((tm_eff, self.tk_eff), lambda i, j, k: (i, k)),
                w_spec,
                pl.BlockSpec((1, tn_run), lambda i, j, k: (0, j)),
            ],
            out_specs=pl.BlockSpec((tm_eff, tn_run), lambda i, j, k: (i, j)),
            scratch_shapes=[pltpu.VMEM((tm_eff, tn_run), jnp.float32)],
            compiler_params=pltpu.CompilerParams(
                dimension_semantics=("parallel", "parallel", "arbitrary"),
                vmem_limit_bytes=48 * 1024 * 1024),
        )(x2d, self.w_kn, self.b2d)

        return out2d.reshape(*lead, self.out_features)


if __name__ == "__main__":
    key = jax.random.PRNGKey(0)
    k1, k2, k3, k4, k5, k6 = jax.random.split(key, 6)

    # --- Test 1: tiny shape matching the module's Linear-over-hidden usage.
    B, S, IN, OUT = 2, 8, 32, 48
    x = jax.random.normal(k1, (B, S, IN), dtype=jnp.float32)
    weight = jax.random.normal(k2, (OUT, IN), dtype=jnp.float32) * 0.05
    bias = jax.random.normal(k3, (OUT,), dtype=jnp.float32) * 0.1
    ref = jnp.einsum("bsi,oi->bso", x, weight) + bias

    layer = QuantLinearPallas(weight, bias)                    # bf16 MXU path
    out = jax.block_until_ready(layer(x))
    assert out.shape == (B, S, OUT)
    assert jnp.allclose(out.astype(jnp.float32), ref, atol=2e-2, rtol=2e-2), \
        "bf16-path mismatch vs reference"

    layer_f32 = QuantLinearPallas(weight, bias, compute_dtype=None)  # exact
    out_f32 = jax.block_until_ready(layer_f32(x))
    assert jnp.allclose(out_f32, ref, atol=1e-5, rtol=1e-5), \
        "f32-path mismatch vs reference"

    # --- Test 2: small multi-tile shape exercising K accumulation, N tiling
    # and the deeper weight-stream pipelining path.
    B2, S2, IN2, OUT2 = 2, 8, 256, 384
    x2 = jax.random.normal(k4, (B2, S2, IN2), dtype=jnp.float32)
    w2 = jax.random.normal(k5, (OUT2, IN2), dtype=jnp.float32) * 0.05
    b2 = jax.random.normal(k6, (OUT2,), dtype=jnp.float32) * 0.1
    ref2 = jnp.einsum("bsi,oi->bso", x2, w2) + b2

    layer2 = QuantLinearPallas(w2, b2, tm=8, tn=128, tk=128)
    out2 = jax.block_until_ready(layer2(x2))
    assert out2.shape == (B2, S2, OUT2)
    assert jnp.allclose(out2.astype(jnp.float32), ref2, atol=3e-2, rtol=3e-2), \
        "multi-tile path mismatch vs reference"

    print("KERNEL_OK")
</pallas_src>

<mosaic_0001>
module attributes {stable_mosaic.version = 11 : i64} {
  func.func @_linear_kernel(%arg0: i32, %arg1: i32, %arg2: i32, %arg3: memref<8x32xf32, #tpu.memory_space<vmem>>, %arg4: memref<32x48xbf16, #tpu.memory_space<vmem>>, %arg5: memref<1x48xf32, #tpu.memory_space<vmem>>, %arg6: memref<8x48xf32, #tpu.memory_space<vmem>>, %arg7: memref<8x48xf32, #tpu.memory_space<vmem>>) attributes {dimension_semantics = [#tpu.dimension_semantics<parallel>, #tpu.dimension_semantics<parallel>, #tpu.dimension_semantics<arbitrary>], iteration_bounds = array<i64: 2, 1, 1>, scalar_prefetch = 0 : i64, scratch_operands = 1 : i64, tpu.core_type = #tpu.core_type<tc>, window_params = [{transform_indices = @transform_0, window_bounds = array<i64: 8, 32>}, {transform_indices = @transform_1, window_bounds = array<i64: 32, 48>}, {transform_indices = @transform_2, window_bounds = array<i64: 1, 48>}, {transform_indices = @transform_3, window_bounds = array<i64: 8, 48>}]} {
    %c0_i32 = arith.constant 0 : i32
    %0 = arith.cmpi eq, %arg2, %c0_i32 : i32
    %1 = arith.extui %0 : i1 to i32
    %c0_i32_0 = arith.constant 0 : i32
    %2 = arith.cmpi ne, %1, %c0_i32_0 : i32
    scf.if %2 {
      %cst_10 = arith.constant 0.000000e+00 : f32
      %13 = vector.broadcast %cst_10 : f32 to vector<8x48xf32>
      %c0_11 = arith.constant 0 : index
      %c0_12 = arith.constant 0 : index
      %14 = vector.load %arg7[%c0_11, %c0_12] : memref<8x48xf32, #tpu.memory_space<vmem>>, vector<8x48xf32>
      tpu.vector_store %arg7[%c0_11, %c0_12], %13 {strides = array<i32>} : memref<8x48xf32, #tpu.memory_space<vmem>>, vector<8x48xf32>,
    } else {
    }
    %c0 = arith.constant 0 : index
    %c0_1 = arith.constant 0 : index
    %3 = vector.load %arg7[%c0, %c0_1] : memref<8x48xf32, #tpu.memory_space<vmem>>, vector<8x48xf32>
    %c0_2 = arith.constant 0 : index
    %c0_3 = arith.constant 0 : index
    %4 = vector.load %arg3[%c0_2, %c0_3] : memref<8x32xf32, #tpu.memory_space<vmem>>, vector<8x32xf32>
    %5 = arith.truncf %4 : vector<8x32xf32> to vector<8x32xbf16>
    %c0_4 = arith.constant 0 : index
    %c0_5 = arith.constant 0 : index
    %6 = vector.load %arg4[%c0_4, %c0_5] : memref<32x48xbf16, #tpu.memory_space<vmem>>, vector<32x48xbf16>
    %cst = arith.constant dense<0.000000e+00> : vector<8x48xf32>
    %7 = tpu.matmul %5, %6, %cst {dimension_numbers = #tpu.dot_dimension_numbers<[1], [0], [0], [1], [0, 0, 1, 1], [], []>} : vector<8x32xbf16>, vector<32x48xbf16>, vector<8x48xf32> -> vector<8x48xf32>
    %8 = arith.addf %3, %7 : vector<8x48xf32>
    %c0_6 = arith.constant 0 : index
    %c0_7 = arith.constant 0 : index
    %9 = vector.load %arg7[%c0_6, %c0_7] : memref<8x48xf32, #tpu.memory_space<vmem>>, vector<8x48xf32>
    tpu.vector_store %arg7[%c0_6, %c0_7], %8 {strides = array<i32>} : memref<8x48xf32, #tpu.memory_space<vmem>>, vector<8x48xf32>,
    %c0_i32_8 = arith.constant 0 : i32
    %10 = arith.cmpi eq, %arg2, %c0_i32_8 : i32
    %11 = arith.extui %10 : i1 to i32
    %c0_i32_9 = arith.constant 0 : i32
    %12 = arith.cmpi ne, %11, %c0_i32_9 : i32
    scf.if %12 {
      %c0_10 = arith.constant 0 : index
      %c0_11 = arith.constant 0 : index
      %13 = vector.load %arg7[%c0_10, %c0_11] : memref<8x48xf32, #tpu.memory_space<vmem>>, vector<8x48xf32>
      %c0_12 = arith.constant 0 : index
      %c0_13 = arith.constant 0 : index
      %14 = vector.load %arg5[%c0_12, %c0_13] : memref<1x48xf32, #tpu.memory_space<vmem>>, vector<1x48xf32>
      %15 = vector.broadcast %14 : vector<1x48xf32> to vector<8x48xf32>
      %16 = arith.addf %13, %15 : vector<8x48xf32>
      %c0_14 = arith.constant 0 : index
      %c0_15 = arith.constant 0 : index
      %17 = vector.load %arg6[%c0_14, %c0_15] : memref<8x48xf32, #tpu.memory_space<vmem>>, vector<8x48xf32>
      tpu.vector_store %arg6[%c0_14, %c0_15], %16 {strides = array<i32>} : memref<8x48xf32, #tpu.memory_space<vmem>>, vector<8x48xf32>,
    } else {
    }
    return
  }
  func.func @transform_0(%arg0: i32, %arg1: i32, %arg2: i32) -> (i32, i32) {
    %c0_i32 = arith.constant 0 : i32
    return %arg0, %arg2 : i32, i32
  }
  func.func @transform_1(%arg0: i32, %arg1: i32, %arg2: i32) -> (i32, i32) {
    %c0_i32 = arith.constant 0 : i32
    return %arg2, %arg1 : i32, i32
  }
  func.func @transform_2(%arg0: i32, %arg1: i32, %arg2: i32) -> (i32, i32) {
    %c0_i32 = arith.constant 0 : i32
    %c0_i32_0 = arith.constant 0 : i32
    return %c0_i32, %arg1 : i32, i32
  }
  func.func @transform_3(%arg0: i32, %arg1: i32, %arg2: i32) -> (i32, i32) {
    %c0_i32 = arith.constant 0 : i32
    return %arg0, %arg1 : i32, i32
  }
}

</mosaic_0001>

<llo_original>
// kernel: tpu_custom_call.1
$region0: #{tpu_custom_call.1}
  #allocation0 [shape = 'u32[]', space=smem, size = 0x4, offset = 0x4, fixed_abs, tag = 'smem constant byte address 0x4 - core index']
  #allocation1 [shape = 'u32[144,128]{1,0:T(1,128)}', space=vmem, size = 0x12000, scoped, tag = 'internal scratch']
  #allocation2 [shape = 'f32[8,48]{1,0:T(8,128)}', space=vmem, size = 0x1000, scoped, tag = 'scratch operand']
  %s0 = inlined_call_operand.hbm [shape: f32[16,32], index: 0, kind: input, shape index: {}]
  %s1 = inlined_call_operand.hbm [shape: bf16[32,48], index: 1, kind: input, shape index: {}]
  %s2 = inlined_call_operand.vmem [shape: f32[1,48], index: 2, kind: input, shape index: {}]
  %s3 = inlined_call_operand.hbm [shape: f32[16,48], index: 3, kind: output, shape index: {}]
  %s4 = sld [smem:[#allocation0]]
  $region61: #{tpu_custom_call.1} parent=0
    _
  %s6 = ssub.s32 1, %s4
  %s7 = scalar_select 0, %s6, %s4
  $region1: #{tpu_custom_call.1} parent=0
    #allocation3 [shape = 'u8[8192]{0}', space=vmem, size = 0x2000, scoped, tag = 'input window, operand 0']
    #allocation4 [shape = 's32[2]{0}', space=sflag, size = 0x8, scoped, tag = 'scoped memory for tpu_custom_call.1']
    #allocation5 [shape = 's32[2]{0}', space=sflag, size = 0x8, scoped, tag = 'scoped memory for tpu_custom_call.1']
    #allocation6 [shape = 'u8[8192]{0}', space=vmem, size = 0x2000, scoped, tag = 'input window, operand 1, single buffered']
    #allocation7 [shape = 's32[1]{0}', space=sflag, size = 0x4, scoped, tag = 'scoped memory for tpu_custom_call.1']
    #allocation8 [shape = 'u8[8192]{0}', space=vmem, size = 0x2000, scoped, tag = 'output window, operand 0']
    %8 = vsyncpa [#allocation4], 0
    %s9 = scalar_lea.sflag [#allocation4], 1
    %10 = vsyncpa %s9, 0
    %11 = vsyncpa [#allocation7], 0
    %12 = vsyncpa [#allocation5], 0
    %s13 = scalar_lea.sflag [#allocation5], 1
    %14 = vsyncpa %s13, 0
    loop: start=0, step=1, limit=4
    $region2: #{tpu_custom_call.1} parent=1 // loop_pre_header
      _
    $region3: #{tpu_custom_call.1} parent=1 // loop_header
      %s16 = sphi 0, %s20
      %p17 = scmp.ge.s32.totalorder %s16, 4
      %s23 = sphi 0, %s42
      %s24 = sphi 0, %s38
      %s25 = sphi 0, %s34
      %s26 = sphi 0, %s23
      %s27 = sphi 0, %s24
      %s28 = sphi 0, %s25
      %s29 = sphi 0, %s26
      %s30 = sphi 0, %s27
      %s31 = sphi 0, %s28
      %s47 = sphi 0, %s49
      %s50 = sphi 0, %s47
      %s51 = sphi 0, %s50
      %s67 = sphi 0, %s51
      %s75 = sphi 0, %s77
      %s78 = sphi 0, %s75
      %s79 = sphi 0, %s78
      %s95 = sphi 0, %s79
      %s101 = sphi 0, %s103
      %s104 = sphi 0, %s101
      %s105 = sphi 0, %s104
      %s121 = sphi 0, %s105
      %s129 = sphi 0, %s131
      %s132 = sphi 0, %s129
      %s133 = sphi 0, %s132
      %s149 = sphi 0, %s133
    $region4: #{tpu_custom_call.1} parent=1 // loop_header_branch
      %19 = sbr.rel (%p17) target = $region8
    $region5: #{tpu_custom_call.1} parent=1 // loop_body
      %s21 = ssub.s32 %s16, 1
      %s22 = ssub.s32 %s16, 2
      %s32 = sadd.s32 1, %s25
      %p33 = scmp.ge.s32.totalorder %s32, 1
      %s34 = scalar_select %p33, 0, %s32
      %s35 = sadd.s32 1, %s24
      %s36 = scalar_select %p33, %s35, %s24
      %p37 = scmp.ge.s32.totalorder %s36, 1
      %s38 = scalar_select %p37, 0, %s36
      %s39 = sadd.s32 1, %s23
      %s40 = scalar_select %p37, %s39, %s23
      %p41 = scmp.ge.s32.totalorder %s40, 2
      %s42 = scalar_select %p41, 0, %s40
      %s43 = ssub.s32 %s23, %s42
      %s44 = ssub.s32 %s25, %s34
      %s45 = sor.u32 %s43, %s44
      %p46 = scmp.eq.s32.totalorder %s45, 0
      %s48 = sadd.s32 %s47, 1
      %s49 = scalar_select %p46, %s47, %s48
      %p52 = pneg %p46
      %p53 = scmp.eq.s32.totalorder %s16, 1
      %p54 = por %p52, %p53
      %p55 = scmp.ne.s32.totalorder %s47, %s50
      %p56 = scmp.eq.s32.totalorder %s16, 0
      %p57 = por %p55, %p56
      %p58 = scmp.ne.s32.totalorder %s47, %s50
      %p59 = scmp.eq.s32.totalorder %s21, 1
      %p60 = por %p58, %p59
      %p61 = scmp.ne.s32.totalorder %s50, %s51
      %p62 = scmp.eq.s32.totalorder %s21, 0
      %p63 = por %p61, %p62
      %p64 = scmp.ne.s32.totalorder %s50, %s51
      %p65 = scmp.eq.s32.totalorder %s22, 1
      %p66 = por %p64, %p65
      %p68 = scmp.ne.s32.totalorder %s51, %s67
      %p69 = scmp.eq.s32.totalorder %s22, 0
      %p70 = por %p68, %p69
      %s71 = ssub.s32 %s25, %s34
      %s72 = ssub.s32 %s24, %s38
      %s73 = sor.u32 %s71, %s72
      %p74 = scmp.eq.s32.totalorder %s73, 0
      %s76 = sadd.s32 %s75, 1
      %s77 = scalar_select %p74, %s75, %s76
      %p80 = pneg %p74
      %p81 = scmp.eq.s32.totalorder %s16, 1
      %p82 = por %p80, %p81
      %p83 = scmp.ne.s32.totalorder %s75, %s78
      %p84 = scmp.eq.s32.totalorder %s16, 0
      %p85 = por %p83, %p84
      %p86 = scmp.ne.s32.totalorder %s75, %s78
      %p87 = scmp.eq.s32.totalorder %s21, 1
      %p88 = por %p86, %p87
      %p89 = scmp.ne.s32.totalorder %s78, %s79
      %p90 = scmp.eq.s32.totalorder %s21, 0
      %p91 = por %p89, %p90
      %p92 = scmp.ne.s32.totalorder %s78, %s79
      %p93 = scmp.eq.s32.totalorder %s22, 1
      %p94 = por %p92, %p93
      %p96 = scmp.ne.s32.totalorder %s79, %s95
      %p97 = scmp.eq.s32.totalorder %s22, 0
      %p98 = por %p96, %p97
      %s99 = ssub.s32 %s24, %s38
      %p100 = scmp.eq.s32.totalorder %s99, 0
      %s102 = sadd.s32 %s101, 1
      %s103 = scalar_select %p100, %s101, %s102
      %p106 = pneg %p100
      %p107 = scmp.eq.s32.totalorder %s16, 1
      %p108 = por %p106, %p107
      %p109 = scmp.ne.s32.totalorder %s101, %s104
      %p110 = scmp.eq.s32.totalorder %s16, 0
      %p111 = por %p109, %p110
      %p112 = scmp.ne.s32.totalorder %s101, %s104
      %p113 = scmp.eq.s32.totalorder %s21, 1
      %p114 = por %p112, %p113
      %p115 = scmp.ne.s32.totalorder %s104, %s105
      %p116 = scmp.eq.s32.totalorder %s21, 0
      %p117 = por %p115, %p116
      %p118 = scmp.ne.s32.totalorder %s104, %s105
      %p119 = scmp.eq.s32.totalorder %s22, 1
      %p120 = por %p118, %p119
      %p122 = scmp.ne.s32.totalorder %s105, %s121
      %p123 = scmp.eq.s32.totalorder %s22, 0
      %p124 = por %p122, %p123
      %s125 = ssub.s32 %s23, %s42
      %s126 = ssub.s32 %s24, %s38
      %s127 = sor.u32 %s125, %s126
      %p128 = scmp.eq.s32.totalorder %s127, 0
      %s130 = sadd.s32 %s129, 1
      %s131 = scalar_select %p128, %s129, %s130
      %p134 = pneg %p128
      %p135 = scmp.eq.s32.totalorder %s16, 1
      %p136 = por %p134, %p135
      %p137 = scmp.ne.s32.totalorder %s129, %s132
      %p138 = scmp.eq.s32.totalorder %s16, 0
      %p139 = por %p137, %p138
      %p140 = scmp.ne.s32.totalorder %s129, %s132
      %p141 = scmp.eq.s32.totalorder %s21, 1
      %p142 = por %p140, %p141
      %p143 = scmp.ne.s32.totalorder %s132, %s133
      %p144 = scmp.eq.s32.totalorder %s21, 0
      %p145 = por %p143, %p144
      %p146 = scmp.ne.s32.totalorder %s132, %s133
      %p147 = scmp.eq.s32.totalorder %s22, 1
      %p148 = por %p146, %p147
      %p150 = scmp.ne.s32.totalorder %s133, %s149
      %p151 = scmp.eq.s32.totalorder %s22, 0
      %p152 = por %p150, %p151
      %p153 = scmp.le.s32.totalorder 1, %s16
      %p154 = scmp.lt.s32.totalorder %s16, 3
      %p155 = pnand %p153, %p154
      %p156 = pneg %p155
      // Predicated region
      $region9: #{tpu_custom_call.1} parent=5 // pred_check
        _
      $region10: #{tpu_custom_call.1} parent=5 // pred_check_branch
        %158 = sbr.rel (%p155) target = $region12
      $region11: #{tpu_custom_call.1} parent=5 // pred_region
        %s159 = ssub.s32 %s16, 1
        // Predicated region
        $region13: #{tpu_custom_call.1} parent=11 // pred_check
          %p160 = pneg %p91
        $region14: #{tpu_custom_call.1} parent=11 // pred_check_branch
          %162 = sbr.rel (%p160) target = $region16
        $region15: #{tpu_custom_call.1} parent=11 // pred_region
          %s163 = smul.u32 4, %s28
          %s165 = ssub.s32 256, 256
          %166 = vsyncadd [#allocation7], %s165
          %s167 = sadd.s32 %s27, %s163
          %s168 = smul.addr %s167, 64
          %s169 = scalar_lea.hbm %s1, %s168
          %s170 = sshll.u32 [#allocation6], 4
          %s171 = int_to_ptr.vmem [resolvable:$true] %s170
          %176 = dma.hbm_to_vmem [thread:$0]  %s169, 256, %s171, [#allocation7], 64, 64, 4
        $region16: #{tpu_custom_call.1} parent=11 // pred_fallthru
          _
        // Predicated region
        $region17: #{tpu_custom_call.1} parent=11 // pred_check
          %p177 = pneg %p117
        $region18: #{tpu_custom_call.1} parent=11 // pred_check_branch
          %179 = sbr.rel (%p177) target = $region20
        $region19: #{tpu_custom_call.1} parent=11 // pred_region
          %p180 = scmp.lt.s32.totalorder %s27, 0
          %s181 = scalar_select %p180, %s27, 0
          %s182 = scalar_lea.vmem %s2, %s181
        $region20: #{tpu_custom_call.1} parent=11 // pred_fallthru
          _
      $region12: #{tpu_custom_call.1} parent=5 // pred_fallthru
        _
      %p183 = scmp.lt.s32.totalorder %s16, 2
      // Predicated region
      $region21: #{tpu_custom_call.1} parent=5 // pred_check
        %p184 = pneg %p183
      $region22: #{tpu_custom_call.1} parent=5 // pred_check_branch
        %186 = sbr.rel (%p184) target = $region24
      $region23: #{tpu_custom_call.1} parent=5 // pred_region
        // Predicated region
        $region25: #{tpu_custom_call.1} parent=23 // pred_check
          %p187 = pneg %p57
        $region26: #{tpu_custom_call.1} parent=23 // pred_check_branch
          %189 = sbr.rel (%p187) target = $region28
        $region27: #{tpu_custom_call.1} parent=23 // pred_region
          %s190 = sand.u32 %s47, 1
          %s191 = scalar_lea.sflag [#allocation4], %s190
          %s192 = sand.u32 %s47, 1
          %s193 = smul.addr %s192, 8
          %s194 = scalar_lea.vmem [#allocation3], %s193
          %s196 = ssub.s32 128, 128
          %197 = vsyncadd %s191, %s196
          %s198 = sadd.s32 %s25, %s23
          %s199 = smul.addr %s198, 128
          %s200 = scalar_lea.hbm %s0, %s199
          %s202 = sshll.u32 %s194, 4
          %s203 = int_to_ptr.vmem [resolvable:$true] %s202
          %205 = dma.hbm_to_vmem [thread:$0]  %s200, 128, %s203, %s191
        $region28: #{tpu_custom_call.1} parent=23 // pred_fallthru
          _
      $region24: #{tpu_custom_call.1} parent=5 // pred_fallthru
        _
      %p206 = scmp.le.s32.totalorder 1, %s16
      %p207 = scmp.lt.s32.totalorder %s16, 3
      %p208 = pnand %p206, %p207
      %p209 = pneg %p208
      // Predicated region
      $region29: #{tpu_custom_call.1} parent=5 // pred_check
        _
      $region30: #{tpu_custom_call.1} parent=5 // pred_check_branch
        %211 = sbr.rel (%p208) target = $region32
      $region31: #{tpu_custom_call.1} parent=5 // pred_region
        %s212 = ssub.s32 %s16, 1
        %s213 = sand.u32 %s50, 1
        %s214 = scalar_lea.sflag [#allocation4], %s213
        %s215 = sand.u32 %s50, 1
        %s216 = smul.addr %s215, 8
        %s217 = scalar_lea.vmem [#allocation3], %s216
        // Predicated region
        $region33: #{tpu_custom_call.1} parent=31 // pred_check
          %p218 = pneg %p63
        $region34: #{tpu_custom_call.1} parent=31 // pred_check_branch
          %220 = sbr.rel (%p218) target = $region36
        $region35: #{tpu_custom_call.1} parent=31 // pred_region
          %221 = dma.done %s214, 128
        $region36: #{tpu_custom_call.1} parent=31 // pred_fallthru
          _
        // Predicated region
        $region37: #{tpu_custom_call.1} parent=31 // pred_check
          %p222 = pneg %p91
        $region38: #{tpu_custom_call.1} parent=31 // pred_check_branch
          %224 = sbr.rel (%p222) target = $region40
        $region39: #{tpu_custom_call.1} parent=31 // pred_region
          %225 = dma.done [#allocation7], 256
        $region40: #{tpu_custom_call.1} parent=31 // pred_fallthru
          _
        %s226 = sand.u32 %s50, 1
        %s227 = scalar_lea.sflag [#allocation4], %s226
        %s228 = sand.u32 %s50, 1
        %s229 = smul.addr %s228, 8
        %s230 = scalar_lea.vmem [#allocation3], %s229
        %p231 = pneg %p63
        %p232 = pneg %p60
        %p233 = pneg %p91
        %p234 = pneg %p88
        %p235 = scmp.lt.s32.totalorder %s27, 0
        %s236 = scalar_select %p235, %s27, 0
        %s237 = scalar_lea.vmem %s2, %s236
        %p238 = pneg %p117
        %p239 = pneg %p114
        %p240 = pneg %p145
        %p241 = pneg %p142
        %s242 = sand.u32 %s132, 1
        %s243 = scalar_lea.sflag [#allocation5], %s242
        %s244 = sand.u32 %s132, 1
        %s245 = smul.addr %s244, 8
        %s246 = scalar_lea.vmem [#allocation8], %s245
        %s247 = smul.u32 4, %s28
        %p248 = scmp.lt.s32.totalorder %s27, 0
        %s249 = scalar_select %p248, %s27, 0
        %s250 = scalar_lea.vmem %s2, %s249
        %p252 = scmp.eq.s32.totalorder %s28, 0
        // Predicated region
        $region41: #{tpu_custom_call.1} parent=31 // pred_check
          %p253 = pneg %p252
        $region42: #{tpu_custom_call.1} parent=31 // pred_check_branch
          %255 = sbr.rel (%p253) target = $region44
        $region43: #{tpu_custom_call.1} parent=31 // pred_region
          %vm256 = vcmask 392192
          %257 = vst.msk [vmem:[#allocation2] sm:$0xff] %vm256, 0.0
        $region44: #{tpu_custom_call.1} parent=31 // pred_fallthru
          _
        %v258 = vld [vmem:[#allocation2] sm:$0xff]
        %v259 = vld [vmem:[%s217] sm:$0xff]
        %v260 = vpack.c.bf16 %v259, %v259
        %v261 = vld [vmem:[#allocation6] sm:$0xf]
        %v262 = vld [vmem:[#allocation6 + $0x4] sm:$0xf]
        %v263 = vld [vmem:[#allocation6 + $0x8] sm:$0xf]
        %v264 = vld [vmem:[#allocation6 + $0xc] sm:$0xf]
        %v269 = vunpack.c.l.b16 %v261
        %v270 = vunpack.c.l.b16 %v262
        %v271 = vunpack.c.l.b16 %v263
        %v272 = vunpack.c.l.b16 %v264
        %v273 = vpack.c.b16 %v270, %v269
        %v274 = vpack.c.b16 %v272, %v271
        %vm277 = vcmask 261120
        %v279 = vsel %vm277, %v260, 0
        %281 = vmatprep.subr.bf16.mxu0 0
        %282 = vmatpush1.bf16.msra.mxu0 %v273
        %283 = vmatprep.subr.bf16.mxu0 0
        %284 = vmatpush1.bf16.msra.mxu0 %v274
        %285 = vmatprep.subr.bf16.mxu0 0
        %286 = vmatpush1.bf16.msra.mxu0 0
        %287 = vmatprep.subr.bf16.mxu0 0
        %288 = vmatpush1.bf16.msra.mxu0 0
        %289 = vmatprep.subr.bf16.mxu0 0
        %290 = vmatpush1.bf16.msra.mxu0 0
        %291 = vmatprep.subr.bf16.mxu0 0
        %292 = vmatpush1.bf16.msra.mxu0 0
        %293 = vmatprep.subr.bf16.mxu0 0
        %294 = vmatpush1.bf16.msra.mxu0 0
        %295 = vmatprep.subr.bf16.mxu0 0
        %296 = vmatpush1.bf16.msra.mxu0 0
        %297 = vmatprep.subr.bf16.mxu0 0
        %298 = vmatpush1.bf16.msra.mxu0 0
        %299 = vmatprep.subr.bf16.mxu0 0
        %300 = vmatpush1.bf16.msra.mxu0 0
        %301 = vmatprep.subr.bf16.mxu0 0
        %302 = vmatpush1.bf16.msra.mxu0 0
        %303 = vmatprep.subr.bf16.mxu0 0
        %304 = vmatpush1.bf16.msra.mxu0 0
        %305 = vmatprep.subr.bf16.mxu0 0
        %306 = vmatpush1.bf16.msra.mxu0 0
        %307 = vmatprep.subr.bf16.mxu0 0
        %308 = vmatpush1.bf16.msra.mxu0 0
        %309 = vmatprep.subr.bf16.mxu0 0
        %310 = vmatpush1.bf16.msra.mxu0 0
        %311 = vmatprep.subr.bf16.mxu0 0
        %312 = vmatpush1.bf16.msra.mxu0 0
        %313 = vmatprep.mubr.bf16.mxu0 0
        %314 = vmatmul.mubr.bf16.gmra.mrb[0].mxu0 %v279
        %v315 = vpop.f32.mrb[0].mxu0
        %v316 = vadd.f32 0.0, %v315
        %v317 = vpop.f32.mrb[0].mxu0
        %v318 = vpop.f32.mrb[0].mxu0
        %v319 = vpop.f32.mrb[0].mxu0
        %320 = vdwg.mxu0
        %v321 = vadd.f32 %v258, %v316
        %vm322 = vcmask 392192
        %323 = vst.msk [vmem:[#allocation2] sm:$0xff] %vm322, %v321
        // Predicated region
        $region45: #{tpu_custom_call.1} parent=31 // pred_check
          %p324 = pneg %p252
        $region46: #{tpu_custom_call.1} parent=31 // pred_check_branch
          %326 = sbr.rel (%p324) target = $region48
        $region47: #{tpu_custom_call.1} parent=31 // pred_region
          %v327 = vld [vmem:[#allocation2] sm:$0xff]
          %v328 = vld [vmem:[%s250] sm:$0x1]
          %v330 = vlaneseq
          %v331 = vshrl.u32 %v330, 7
          %v332 = vsub.s32 0, %v331
          %v333 = vrot.slane %v328, %v332
          %v335 = vadd.f32 %v327, %v333
          %336 = vst.msk [vmem:[%s246] sm:$0xff] %vm322, %v335
        $region48: #{tpu_custom_call.1} parent=31 // pred_fallthru
          _
        %s337 = sand.u32 %s132, 1
        %s338 = scalar_lea.sflag [#allocation5], %s337
        %s339 = sand.u32 %s132, 1
        %s340 = smul.addr %s339, 8
        %s341 = scalar_lea.vmem [#allocation8], %s340
        // Predicated region
        $region49: #{tpu_custom_call.1} parent=31 // pred_check
          %p342 = pneg %p142
        $region50: #{tpu_custom_call.1} parent=31 // pred_check_branch
          %344 = sbr.rel (%p342) target = $region52
        $region51: #{tpu_custom_call.1} parent=31 // pred_region
          %s346 = ssub.s32 128, 128
          %347 = vsyncadd %s338, %s346
          %s348 = sadd.s32 %s27, %s26
          %s349 = smul.addr %s348, 128
          %s350 = scalar_lea.hbm %s3, %s349
          %s352 = sshll.u32 %s341, 4
          %s353 = int_to_ptr.vmem [resolvable:$true] %s352
          %355 = dma.vmem_to_hbm [thread:$0]  %s353, 128, %s350, %s338
        $region52: #{tpu_custom_call.1} parent=31 // pred_fallthru
          _
      $region32: #{tpu_custom_call.1} parent=5 // pred_fallthru
        _
      %p356 = scmp.le.s32.totalorder 2, %s16
      // Predicated region
      $region53: #{tpu_custom_call.1} parent=5 // pred_check
        %p357 = pneg %p356
      $region54: #{tpu_custom_call.1} parent=5 // pred_check_branch
        %359 = sbr.rel (%p357) target = $region56
      $region55: #{tpu_custom_call.1} parent=5 // pred_region
        %s360 = ssub.s32 %s16, 2
        // Predicated region
        $region57: #{tpu_custom_call.1} parent=55 // pred_check
          %p361 = pneg %p148
        $region58: #{tpu_custom_call.1} parent=55 // pred_check_branch
          %363 = sbr.rel (%p361) target = $region60
        $region59: #{tpu_custom_call.1} parent=55 // pred_region
          %s364 = sand.u32 %s133, 1
          %s365 = scalar_lea.sflag [#allocation5], %s364
          %s366 = sand.u32 %s133, 1
          %s367 = smul.addr %s366, 8
          %s368 = scalar_lea.vmem [#allocation8], %s367
          %369 = dma.done %s365, 128
        $region60: #{tpu_custom_call.1} parent=55 // pred_fallthru
          _
      $region56: #{tpu_custom_call.1} parent=5 // pred_fallthru
        _
    $region6: #{tpu_custom_call.1} parent=1 // loop_footer
      %s20 = sadd.s32 1, %s16
    $region7: #{tpu_custom_call.1} parent=1 // loop_footer_branch
      %15 = sbr.rel target = $region3
    $region8: #{tpu_custom_call.1} parent=1 // loop_exit
      _
    %370 = vsyncpa [#allocation4], 1
    %s371 = scalar_lea.sflag [#allocation4], 1
    %372 = vsyncpa %s371, 1
    %373 = vsyncpa [#allocation7], 1
    %374 = vsyncpa [#allocation5], 1
    %s375 = scalar_lea.sflag [#allocation5], 1
    %376 = vsyncpa %s375, 1

</llo_original>
